<compile_context>
chip_gen: v5e
topology: v5e:2x2
jax: 0.10.0
libtpu: 0.0.40
codegen_flags: <defaults>
</compile_context>

<pallas_src>
import functools
import math

import jax
import jax.numpy as jnp
from jax import lax
from jax.experimental import pallas as pl
from jax.experimental.pallas import tpu as pltpu

_LANE = 128


def _round_up(x, mult):
    return ((x + mult - 1) // mult) * mult


def _sdpa_kernel(q_ref, k_ref, v_ref, o_ref, qs_ref, *,
                 inv_temper, compute_dtype, scale_v, approx_recip):
    """One (batch-block, m-tile) grid step.

    q_ref : (Bb, n,  dk)    resident across the m axis
    k_ref : (Bb, tm, dk)    streamed along m
    v_ref : (Bb, tm, dv_p)  streamed along m
    o_ref : (Bb, n,  dv_p)  f32 output block, resident across m; accumulated in place
    qs_ref: (Bb, n,  dk)    compute-dtype scratch holding Q * (1/sqrt(d_model))
    """
    mi = pl.program_id(1)

    @pl.when(mi == 0)
    def _():
        # Hoist the Q scale + cast out of the m loop (Q is block-resident).
        qs_ref[...] = (q_ref[...] * inv_temper).astype(compute_dtype)
        # Accumulate straight into the f32 output block: no acc scratch, no epilogue copy.
        o_ref[...] = jnp.zeros_like(o_ref)

    def body(b, carry):
        q = qs_ref[b]                                   # (n, dk)  compute dtype
        k = k_ref[b].astype(compute_dtype)              # (tm, dk)

        if scale_v:
            # Large-n path (n > dv_p): scores laid out (tm, n) so the per-key
            # softmax stats are (tm, 1) lane reductions, and the normalization
            # is applied to V rows (tm*dv multiplies) instead of the big (n, tm)
            # score tile.
            s = lax.dot_general(k, q, (((1,), (1,)), ((), ())),
                                preferred_element_type=jnp.float32)      # (tm, n)
            s_max = jnp.max(s, axis=1, keepdims=True)
            e = jnp.exp(s - s_max)                                       # (tm, n)
            inv = pl.reciprocal(jnp.sum(e, axis=1, keepdims=True),
                                approx=approx_recip)                     # (tm, 1)
            v_n = (v_ref[b].astype(jnp.float32) * inv).astype(compute_dtype)
            contrib = lax.dot_general(e.astype(compute_dtype), v_n,
                                      (((0,), (0,)), ((), ())),
                                      preferred_element_type=jnp.float32)  # (n, dv_p)
        else:
            # Small-n path (n <= dv_p): scores laid out (n, tm) -- the lane axis
            # is the 128-multiple key tile; normalize the score tile itself.
            s = lax.dot_general(q, k, (((1,), (1,)), ((), ())),
                                preferred_element_type=jnp.float32)      # (n, tm)
            s_max = jnp.max(s, axis=0, keepdims=True)
            e = jnp.exp(s - s_max)
            inv = pl.reciprocal(jnp.sum(e, axis=0, keepdims=True),
                                approx=approx_recip)                     # (1, tm)
            w = (e * inv).astype(compute_dtype)
            contrib = lax.dot_general(w, v_ref[b].astype(compute_dtype),
                                      (((1,), (0,)), ((), ())),
                                      preferred_element_type=jnp.float32)  # (n, dv_p)

        o_ref[b] += contrib
        return carry

    # Short, static batch-block loop: unrolled for LLO scheduler visibility.
    lax.fori_loop(0, q_ref.shape[0], body, 0, unroll=True)


def _vmem_budget():
    """Per-generation (accounted-bytes budget, vmem_limit_bytes)."""
    kind = ""
    try:
        kind = jax.devices()[0].device_kind.lower()
    except Exception:
        pass
    if any(g in kind for g in ("v4", "v5", "v6")):
        # v4 / v5e / v6e: 128 MiB physical VMEM -- the 16-32 MiB scoped default
        # underuses it badly; allow ~100 MiB and account ~80 MiB.
        phys = 128 * 2**20
        return min(80 * 2**20, (62 * phys) // 100), min(100 * 2**20, (78 * phys) // 100)
    # v7x-class (64 MiB per TensorCore) or unknown: stay conservative and leave
    # headroom for Mosaic internal scratch + unaccounted temporaries.
    phys = 64 * 2**20
    try:
        phys = min(phys, int(pltpu.get_tpu_info().vmem_capacity_bytes))
    except Exception:
        pass
    return (58 * phys) // 100, (75 * phys) // 100


def _choose_tiles(B, n, m, dk, dv_p, in_bytes, comp_bytes, budget, kv_buffers):
    """VMEM-aware (tm, m_padded, Bb).

    tm is a multiple of 128, sized against the per-generation budget including
    the dominant (n, tm) score temporaries, capped at 2048.
    """
    # tm-independent accounted bytes (batch block of 1).
    fixed = (2 * n * dk * in_bytes          # Q block (double-buffered)
             + 2 * n * dv_p * 4             # f32 output block (double-buffered)
             + n * dk * comp_bytes)         # scaled-Q scratch
    # Accounted bytes per key column: K/V pipeline buffers + live score-tile
    # temporaries (s f32 + e f32 + compute-dtype operand ~ 10-12 B/elem) + the
    # normalized-V temporary.
    per_col = kv_buffers * (dk + dv_p) * in_bytes + 12 * n + 4 * dv_p

    tm_max = max(_LANE, min(2048, ((budget - fixed) // per_col // _LANE) * _LANE))
    # TODO(synk): for very large n even tm=128 can overflow VMEM because the
    # softmax couples all n rows of a key column; that regime would need a
    # two-pass (max, then sum) sweep over n which is not implemented here.

    tiles = pl.cdiv(m, tm_max)
    tm = _round_up(pl.cdiv(m, tiles), _LANE)   # keeps zero-padding of m < 128 per tile
    m_p = tm * tiles

    # Batch blocking: when the whole key axis fits in one tile and per-batch
    # blocks are tiny, fold several batches into one grid step to amortize the
    # ~0.35us per-grid-step overhead with bigger contiguous DMAs.
    Bb = 1
    per_batch = (n * dk + tm * (dk + dv_p)) * in_bytes + n * dv_p * 4
    if tiles == 1 and per_batch <= 256 * 1024:
        for d in range(2, min(B, 8) + 1):
            if B % d == 0 and d * per_batch <= 2 * 1024 * 1024:
                Bb = d
    return tm, m_p, Bb


def scaled_dot_product_attention(Q, K, V, d_model, *,
                                 use_bf16_matmul=True,
                                 pad_lanes=True,
                                 kv_buffers=2,
                                 approx_reciprocal=True):
    """Q: (B, n, dk), K: (B, m, dk), V: (B, m, dv).

    Softmax is over dim=1 of the (B, n, m) score tensor (the *query* axis),
    exactly as in the reference PyTorch module.  bf16 inputs are accepted
    end-to-end (no f32 upcast of the streamed K/V); f32 inputs use bf16 MXU
    operands with f32 accumulation unless use_bf16_matmul=False.
    `kv_buffers=3` deepens the K/V pipeline (worth trying on v5e if profiling
    shows exposed DMA).
    """
    B, n, dk = Q.shape
    Bk, m, dkk = K.shape
    Bv, mv, dv = V.shape
    assert (Bk, dkk) == (B, dk) and (Bv, mv) == (B, m)

    in_dtype = Q.dtype
    in_bytes = jnp.dtype(in_dtype).itemsize
    compute_dtype = (jnp.bfloat16
                     if (use_bf16_matmul and in_dtype == jnp.float32)
                     else in_dtype)
    comp_bytes = jnp.dtype(compute_dtype).itemsize
    inv_temper = float(1.0 / math.sqrt(d_model))

    # Lane-dense output: pad dv to a multiple of 128 so output stores and the
    # W@V matmul columns are unmasked (zero V columns contribute exact zeros).
    # dk is deliberately NOT padded: zero-padding the contraction dim only
    # inflates Q/K HBM traffic without saving MXU passes.
    dv_p = _round_up(dv, _LANE) if pad_lanes else dv

    budget, vmem_limit = _vmem_budget()
    tm, m_p, Bb = _choose_tiles(B, n, m, dk, dv_p, in_bytes, comp_bytes,
                                budget, max(2, kv_buffers))

    # Zero-pad the key axis to a whole number of tiles.  Padded keys produce a
    # constant score column whose softmax weights multiply zero V rows, so the
    # result is unchanged (this relies on softmax being over the query axis).
    if m_p != m:
        K = jnp.pad(K, ((0, 0), (0, m_p - m), (0, 0)))
        V = jnp.pad(V, ((0, 0), (0, m_p - m), (0, 0)))
    if dv_p != dv:
        V = jnp.pad(V, ((0, 0), (0, 0), (0, dv_p - dv)))

    n_m_tiles = m_p // tm
    scale_v = n > dv_p   # normalize V rows instead of the (n, tm) score tile

    kernel = functools.partial(
        _sdpa_kernel, inv_temper=inv_temper, compute_dtype=compute_dtype,
        scale_v=scale_v, approx_recip=approx_reciprocal)

    kv_pipeline = {} if kv_buffers <= 2 else {"pipeline_mode": pl.Buffered(kv_buffers)}

    cost = pl.CostEstimate(
        flops=2 * B * n * m_p * (dk + dv_p),
        transcendentals=B * n * m_p,
        bytes_accessed=B * (n * dk + m_p * (dk + dv_p)) * in_bytes + B * n * dv_p * 4,
    )

    out = pl.pallas_call(
        kernel,
        out_shape=jax.ShapeDtypeStruct((B, n, dv_p), jnp.float32),
        grid_spec=pltpu.PrefetchScalarGridSpec(
            num_scalar_prefetch=0,
            grid=(B // Bb, n_m_tiles),   # batch blocks: parallel; key axis: reduction
            in_specs=[
                pl.BlockSpec((Bb, n, dk), lambda b, mi: (b, 0, 0)),              # Q (resident)
                pl.BlockSpec((Bb, tm, dk), lambda b, mi: (b, mi, 0), **kv_pipeline),   # K (streamed)
                pl.BlockSpec((Bb, tm, dv_p), lambda b, mi: (b, mi, 0), **kv_pipeline), # V (streamed)
            ],
            out_specs=pl.BlockSpec((Bb, n, dv_p), lambda b, mi: (b, 0, 0)),
            scratch_shapes=[pltpu.VMEM((Bb, n, dk), compute_dtype)],
        ),
        compiler_params=pltpu.CompilerParams(
            dimension_semantics=("parallel", "arbitrary"),
            vmem_limit_bytes=vmem_limit,
        ),
        cost_estimate=cost,
    )(Q, K, V)

    # TODO(synk): with B == 1 the single parallel grid axis leaves the second
    # v7x TensorCore idle; splitting the m-reduction across cores would need an
    # explicit cross-core combine and is not implemented here.

    if dv_p != dv:
        out = out[:, :, :dv]
    return out.astype(in_dtype)


def _reference(Q, K, V, d_model):
    temper = math.sqrt(d_model)
    qk = jnp.einsum("bnd,bmd->bnm", Q, K) / temper
    w = jax.nn.softmax(qk, axis=1)   # dim=1 == query axis, matching the PyTorch code
    return jnp.einsum("bnm,bmd->bnd", w, V)


if __name__ == "__main__":
    key = jax.random.PRNGKey(0)
    kq, kk, kv = jax.random.split(key, 3)

    batch, n, m, d_model = 2, 8, 8, 32   # dk == dv == d_model
    Q = jax.random.normal(kq, (batch, n, d_model), dtype=jnp.float32)
    K = jax.random.normal(kk, (batch, m, d_model), dtype=jnp.float32)
    V = jax.random.normal(kv, (batch, m, d_model), dtype=jnp.float32)

    out = scaled_dot_product_attention(Q, K, V, d_model)
    out = jax.block_until_ready(out)

    ref = _reference(Q, K, V, d_model)
    assert out.shape == (batch, n, d_model)
    assert out.dtype == Q.dtype
    # bf16 MXU operands + approx reciprocal -> loosened tolerance vs pure f32.
    assert jnp.allclose(out, ref, atol=2e-2, rtol=2e-2), "mismatch vs reference"

    print("KERNEL_OK")
</pallas_src>

<mosaic_0001>
module attributes {stable_mosaic.version = 11 : i64} {
  func.func @_sdpa_kernel(%arg0: i32, %arg1: i32, %arg2: memref<2x8x32xf32, #tpu.memory_space<vmem>>, %arg3: memref<2x128x32xf32, #tpu.memory_space<vmem>>, %arg4: memref<2x128x128xf32, #tpu.memory_space<vmem>>, %arg5: memref<2x8x128xf32, #tpu.memory_space<vmem>>, %arg6: memref<2x8x32xbf16, #tpu.memory_space<vmem>>) attributes {dimension_semantics = [#tpu.dimension_semantics<parallel>, #tpu.dimension_semantics<arbitrary>], iteration_bounds = array<i64: 1, 1>, scalar_prefetch = 0 : i64, scratch_operands = 1 : i64, tpu.core_type = #tpu.core_type<tc>, window_params = [{transform_indices = @transform_0, window_bounds = array<i64: 2, 8, 32>}, {transform_indices = @transform_1, window_bounds = array<i64: 2, 128, 32>}, {transform_indices = @transform_2, window_bounds = array<i64: 2, 128, 128>}, {transform_indices = @transform_3, window_bounds = array<i64: 2, 8, 128>}]} {
    %c0_i32 = arith.constant 0 : i32
    %0 = arith.cmpi eq, %arg1, %c0_i32 : i32
    %1 = arith.extui %0 : i1 to i32
    %c0_i32_0 = arith.constant 0 : i32
    %2 = arith.cmpi ne, %1, %c0_i32_0 : i32
    scf.if %2 {
      %c0_28 = arith.constant 0 : index
      %c0_29 = arith.constant 0 : index
      %c0_30 = arith.constant 0 : index
      %67 = vector.load %arg2[%c0_28, %c0_29, %c0_30] : memref<2x8x32xf32, #tpu.memory_space<vmem>>, vector<2x8x32xf32>
      %cst_31 = arith.constant 0.176776692 : f32
      %68 = vector.broadcast %cst_31 : f32 to vector<2x8x32xf32>
      %69 = arith.mulf %67, %68 : vector<2x8x32xf32>
      %70 = arith.truncf %69 : vector<2x8x32xf32> to vector<2x8x32xbf16>
      %c0_32 = arith.constant 0 : index
      %c0_33 = arith.constant 0 : index
      %c0_34 = arith.constant 0 : index
      %71 = vector.load %arg6[%c0_32, %c0_33, %c0_34] : memref<2x8x32xbf16, #tpu.memory_space<vmem>>, vector<2x8x32xbf16>
      tpu.vector_store %arg6[%c0_32, %c0_33, %c0_34], %70 {strides = array<i32>} : memref<2x8x32xbf16, #tpu.memory_space<vmem>>, vector<2x8x32xbf16>,
      %cst_35 = arith.constant 0.000000e+00 : f32
      %72 = vector.broadcast %cst_35 : f32 to vector<2x8x128xf32>
      %c0_36 = arith.constant 0 : index
      %c0_37 = arith.constant 0 : index
      %c0_38 = arith.constant 0 : index
      %73 = vector.load %arg5[%c0_36, %c0_37, %c0_38] : memref<2x8x128xf32, #tpu.memory_space<vmem>>, vector<2x8x128xf32>
      tpu.vector_store %arg5[%c0_36, %c0_37, %c0_38], %72 {strides = array<i32>} : memref<2x8x128xf32, #tpu.memory_space<vmem>>, vector<2x8x128xf32>,
    } else {
    }
    %c0_i32_1 = arith.constant 0 : i32
    %3 = arith.index_cast %c0_i32_1 : i32 to index
    %c0 = arith.constant 0 : index
    %c0_2 = arith.constant 0 : index
    %4 = vector.load %arg6[%3, %c0, %c0_2] : memref<2x8x32xbf16, #tpu.memory_space<vmem>>, vector<1x8x32xbf16>
    %5 = vector.shape_cast %4 : vector<1x8x32xbf16> to vector<8x32xbf16>
    %6 = arith.index_cast %c0_i32_1 : i32 to index
    %c0_3 = arith.constant 0 : index
    %c0_4 = arith.constant 0 : index
    %7 = vector.load %arg3[%6, %c0_3, %c0_4] : memref<2x128x32xf32, #tpu.memory_space<vmem>>, vector<1x128x32xf32>
    %8 = vector.shape_cast %7 : vector<1x128x32xf32> to vector<128x32xf32>
    %9 = arith.truncf %8 : vector<128x32xf32> to vector<128x32xbf16>
    %cst = arith.constant dense<0.000000e+00> : vector<8x128xf32>
    %10 = tpu.matmul %5, %9, %cst {dimension_numbers = #tpu.dot_dimension_numbers<[1], [1], [0], [0], [0, 0, 1, 0], [], []>} : vector<8x32xbf16>, vector<128x32xbf16>, vector<8x128xf32> -> vector<8x128xf32>
    %cst_5 = arith.constant dense<0xFF800000> : vector<128xf32>
    %11 = vector.multi_reduction <maximumf>, %10, %cst_5 [0] : vector<8x128xf32> to vector<128xf32>
    %12 = vector.shape_cast %11 : vector<128xf32> to vector<1x128xf32>
    %13 = vector.broadcast %12 : vector<1x128xf32> to vector<8x128xf32>
    %14 = arith.subf %10, %13 : vector<8x128xf32>
    %15 = math.exp %14 : vector<8x128xf32>
    %cst_6 = arith.constant dense<0.000000e+00> : vector<128xf32>
    %16 = vector.multi_reduction <add>, %15, %cst_6 [0] : vector<8x128xf32> to vector<128xf32>
    %17 = vector.shape_cast %16 : vector<128xf32> to vector<1x128xf32>
    %18 = tpu.reciprocal %17 {approx = true} : vector<1x128xf32> -> vector<1x128xf32>
    %19 = vector.broadcast %18 : vector<1x128xf32> to vector<8x128xf32>
    %20 = arith.mulf %15, %19 : vector<8x128xf32>
    %21 = arith.truncf %20 : vector<8x128xf32> to vector<8x128xbf16>
    %22 = arith.index_cast %c0_i32_1 : i32 to index
    %c0_7 = arith.constant 0 : index
    %c0_8 = arith.constant 0 : index
    %23 = vector.load %arg4[%22, %c0_7, %c0_8] : memref<2x128x128xf32, #tpu.memory_space<vmem>>, vector<1x128x128xf32>
    %24 = vector.shape_cast %23 : vector<1x128x128xf32> to vector<128x128xf32>
    %25 = arith.truncf %24 : vector<128x128xf32> to vector<128x128xbf16>
    %cst_9 = arith.constant dense<0.000000e+00> : vector<8x128xf32>
    %26 = tpu.matmul %21, %25, %cst_9 {dimension_numbers = #tpu.dot_dimension_numbers<[1], [0], [0], [1], [0, 0, 1, 1], [], []>} : vector<8x128xbf16>, vector<128x128xbf16>, vector<8x128xf32> -> vector<8x128xf32>
    %27 = arith.index_cast %c0_i32_1 : i32 to index
    %c0_10 = arith.constant 0 : index
    %c0_11 = arith.constant 0 : index
    %28 = vector.load %arg5[%27, %c0_10, %c0_11] : memref<2x8x128xf32, #tpu.memory_space<vmem>>, vector<1x8x128xf32>
    %29 = vector.shape_cast %28 : vector<1x8x128xf32> to vector<8x128xf32>
    %30 = arith.addf %29, %26 : vector<8x128xf32>
    %31 = arith.index_cast %c0_i32_1 : i32 to index
    %c0_12 = arith.constant 0 : index
    %c0_13 = arith.constant 0 : index
    %32 = vector.load %arg5[%31, %c0_12, %c0_13] : memref<2x8x128xf32, #tpu.memory_space<vmem>>, vector<1x8x128xf32>
    %33 = vector.shape_cast %32 : vector<1x8x128xf32> to vector<8x128xf32>
    %34 = vector.shape_cast %30 : vector<8x128xf32> to vector<1x8x128xf32>
    tpu.vector_store %arg5[%31, %c0_12, %c0_13], %34 {strides = array<i32>} : memref<2x8x128xf32, #tpu.memory_space<vmem>>, vector<1x8x128xf32>,
    %c1_i32 = arith.constant 1 : i32
    %35 = arith.index_cast %c1_i32 : i32 to index
    %c0_14 = arith.constant 0 : index
    %c0_15 = arith.constant 0 : index
    %36 = vector.load %arg6[%35, %c0_14, %c0_15] : memref<2x8x32xbf16, #tpu.memory_space<vmem>>, vector<1x8x32xbf16>
    %37 = vector.shape_cast %36 : vector<1x8x32xbf16> to vector<8x32xbf16>
    %38 = arith.index_cast %c1_i32 : i32 to index
    %c0_16 = arith.constant 0 : index
    %c0_17 = arith.constant 0 : index
    %39 = vector.load %arg3[%38, %c0_16, %c0_17] : memref<2x128x32xf32, #tpu.memory_space<vmem>>, vector<1x128x32xf32>
    %40 = vector.shape_cast %39 : vector<1x128x32xf32> to vector<128x32xf32>
    %41 = arith.truncf %40 : vector<128x32xf32> to vector<128x32xbf16>
    %cst_18 = arith.constant dense<0.000000e+00> : vector<8x128xf32>
    %42 = tpu.matmul %37, %41, %cst_18 {dimension_numbers = #tpu.dot_dimension_numbers<[1], [1], [0], [0], [0, 0, 1, 0], [], []>} : vector<8x32xbf16>, vector<128x32xbf16>, vector<8x128xf32> -> vector<8x128xf32>
    %cst_19 = arith.constant dense<0xFF800000> : vector<128xf32>
    %43 = vector.multi_reduction <maximumf>, %42, %cst_19 [0] : vector<8x128xf32> to vector<128xf32>
    %44 = vector.shape_cast %43 : vector<128xf32> to vector<1x128xf32>
    %45 = vector.broadcast %44 : vector<1x128xf32> to vector<8x128xf32>
    %46 = arith.subf %42, %45 : vector<8x128xf32>
    %47 = math.exp %46 : vector<8x128xf32>
    %cst_20 = arith.constant dense<0.000000e+00> : vector<128xf32>
    %48 = vector.multi_reduction <add>, %47, %cst_20 [0] : vector<8x128xf32> to vector<128xf32>
    %49 = vector.shape_cast %48 : vector<128xf32> to vector<1x128xf32>
    %50 = tpu.reciprocal %49 {approx = true} : vector<1x128xf32> -> vector<1x128xf32>
    %51 = vector.broadcast %50 : vector<1x128xf32> to vector<8x128xf32>
    %52 = arith.mulf %47, %51 : vector<8x128xf32>
    %53 = arith.truncf %52 : vector<8x128xf32> to vector<8x128xbf16>
    %54 = arith.index_cast %c1_i32 : i32 to index
    %c0_21 = arith.constant 0 : index
    %c0_22 = arith.constant 0 : index
    %55 = vector.load %arg4[%54, %c0_21, %c0_22] : memref<2x128x128xf32, #tpu.memory_space<vmem>>, vector<1x128x128xf32>
    %56 = vector.shape_cast %55 : vector<1x128x128xf32> to vector<128x128xf32>
    %57 = arith.truncf %56 : vector<128x128xf32> to vector<128x128xbf16>
    %cst_23 = arith.constant dense<0.000000e+00> : vector<8x128xf32>
    %58 = tpu.matmul %53, %57, %cst_23 {dimension_numbers = #tpu.dot_dimension_numbers<[1], [0], [0], [1], [0, 0, 1, 1], [], []>} : vector<8x128xbf16>, vector<128x128xbf16>, vector<8x128xf32> -> vector<8x128xf32>
    %59 = arith.index_cast %c1_i32 : i32 to index
    %c0_24 = arith.constant 0 : index
    %c0_25 = arith.constant 0 : index
    %60 = vector.load %arg5[%59, %c0_24, %c0_25] : memref<2x8x128xf32, #tpu.memory_space<vmem>>, vector<1x8x128xf32>
    %61 = vector.shape_cast %60 : vector<1x8x128xf32> to vector<8x128xf32>
    %62 = arith.addf %61, %58 : vector<8x128xf32>
    %63 = arith.index_cast %c1_i32 : i32 to index
    %c0_26 = arith.constant 0 : index
    %c0_27 = arith.constant 0 : index
    %64 = vector.load %arg5[%63, %c0_26, %c0_27] : memref<2x8x128xf32, #tpu.memory_space<vmem>>, vector<1x8x128xf32>
    %65 = vector.shape_cast %64 : vector<1x8x128xf32> to vector<8x128xf32>
    %66 = vector.shape_cast %62 : vector<8x128xf32> to vector<1x8x128xf32>
    tpu.vector_store %arg5[%63, %c0_26, %c0_27], %66 {strides = array<i32>} : memref<2x8x128xf32, #tpu.memory_space<vmem>>, vector<1x8x128xf32>,
    %c2_i32 = arith.constant 2 : i32
    return
  }
  func.func @transform_0(%arg0: i32, %arg1: i32) -> (i32, i32, i32) {
    %c0_i32 = arith.constant 0 : i32
    %c0_i32_0 = arith.constant 0 : i32
    %c0_i32_1 = arith.constant 0 : i32
    return %arg0, %c0_i32, %c0_i32_0 : i32, i32, i32
  }
  func.func @transform_1(%arg0: i32, %arg1: i32) -> (i32, i32, i32) {
    %c0_i32 = arith.constant 0 : i32
    %c0_i32_0 = arith.constant 0 : i32
    return %arg0, %arg1, %c0_i32 : i32, i32, i32
  }
  func.func @transform_2(%arg0: i32, %arg1: i32) -> (i32, i32, i32) {
    %c0_i32 = arith.constant 0 : i32
    %c0_i32_0 = arith.constant 0 : i32
    return %arg0, %arg1, %c0_i32 : i32, i32, i32
  }
  func.func @transform_3(%arg0: i32, %arg1: i32) -> (i32, i32, i32) {
    %c0_i32 = arith.constant 0 : i32
    %c0_i32_0 = arith.constant 0 : i32
    %c0_i32_1 = arith.constant 0 : i32
    return %arg0, %c0_i32, %c0_i32_0 : i32, i32, i32
  }
}

</mosaic_0001>

<llo_original>
// kernel: tpu_custom_call.1
$region0: #{tpu_custom_call.1}
  #allocation0 [shape = 'u32[]', space=smem, size = 0x4, offset = 0x4, fixed_abs, tag = 'smem constant byte address 0x4 - core index']
  #allocation1 [shape = 'u32[72,128]{1,0:T(1,128)}', space=vmem, size = 0x9000, scoped, tag = 'internal scratch']
  #allocation2 [shape = 'bf16[2,8,32]{2,1,0:T(8,128)(2,1)}', space=vmem, size = 0x1000, scoped, tag = 'scratch operand']
  %s0 = inlined_call_operand.vmem [shape: f32[2,8,32], index: 0, kind: input, shape index: {}]
  %s1 = inlined_call_operand.vmem [shape: f32[2,128,32], index: 1, kind: input, shape index: {}]
  %s2 = inlined_call_operand.vmem [shape: f32[2,128,128], index: 2, kind: input, shape index: {}]
  %s3 = inlined_call_operand.hbm [shape: f32[2,8,128], index: 3, kind: output, shape index: {}]
  %s4 = sld [smem:[#allocation0]]
  $region26: #{tpu_custom_call.1} parent=0
    _
  %s6 = ssub.s32 1, %s4
  %s7 = scalar_select 0, %s6, %s4
  $region1: #{tpu_custom_call.1} parent=0
    #allocation3 [shape = 'u8[8192]{0}', space=vmem, size = 0x2000, scoped, tag = 'output window, operand 0, single buffered']
    #allocation4 [shape = 's32[1]{0}', space=sflag, size = 0x4, scoped, tag = 'scoped memory for tpu_custom_call.1']
    %8 = vsyncpa [#allocation4], 0
    // Predicated region
    $region2: #{tpu_custom_call.1} parent=1 // pred_check
      _
    $region3: #{tpu_custom_call.1} parent=1 // pred_check_branch
      %10 = sbr.rel (0) target = $region5
    $region4: #{tpu_custom_call.1} parent=1 // pred_region
      _
    $region5: #{tpu_custom_call.1} parent=1 // pred_fallthru
      _
    // Predicated region
    $region6: #{tpu_custom_call.1} parent=1 // pred_check
      _
    $region7: #{tpu_custom_call.1} parent=1 // pred_check_branch
      %12 = sbr.rel (0) target = $region9
    $region8: #{tpu_custom_call.1} parent=1 // pred_region
      _
    $region9: #{tpu_custom_call.1} parent=1 // pred_fallthru
      _
    // Predicated region
    $region10: #{tpu_custom_call.1} parent=1 // pred_check
      _
    $region11: #{tpu_custom_call.1} parent=1 // pred_check_branch
      %14 = sbr.rel (0) target = $region13
    $region12: #{tpu_custom_call.1} parent=1 // pred_region
      _
    $region13: #{tpu_custom_call.1} parent=1 // pred_fallthru
      _
    %p15 = scmp.eq.s32.totalorder 0, 0
    // Predicated region
    $region14: #{tpu_custom_call.1} parent=1 // pred_check
      %p16 = pneg %p15
    $region15: #{tpu_custom_call.1} parent=1 // pred_check_branch
      %18 = sbr.rel (%p16) target = $region17
    $region16: #{tpu_custom_call.1} parent=1 // pred_region
      %v19 = vld [vmem:[%s0] sm:$0xff]
      %v20 = vld [vmem:[%s0 + $0x8] sm:$0xff]
      %v21 = vmul.f32 %v19, 0.17677669
      %v22 = vmul.f32 %v20, 0.17677669
      %v23 = vpack.c.bf16 %v21, %v21
      %v24 = vpack.c.bf16 %v22, %v22
      %vm25 = vcmask 257024
      %26 = vst.msk [vmem:[#allocation2] sm:$0xf] %vm25, %v23
      %27 = vst.msk [vmem:[#allocation2 + $0x4] sm:$0xf] %vm25, %v24
      %28 = vst [vmem:[#allocation3] sm:$0xff] 0.0
      %29 = vst [vmem:[#allocation3 + $0x8] sm:$0xff] 0.0
    $region17: #{tpu_custom_call.1} parent=1 // pred_fallthru
      _
    %v30 = vld [vmem:[#allocation2] sm:$0xf]
    %v31 = vld [vmem:[%s1] sm:$0xff]
    %v32 = vld [vmem:[%s1 + $0x8] sm:$0xff]
    %v33 = vld [vmem:[%s1 + $0x10] sm:$0xff]
    %v34 = vld [vmem:[%s1 + $0x18] sm:$0xff]
    %v35 = vld [vmem:[%s1 + $0x20] sm:$0xff]
    %v36 = vld [vmem:[%s1 + $0x28] sm:$0xff]
    %v37 = vld [vmem:[%s1 + $0x30] sm:$0xff]
    %v38 = vld [vmem:[%s1 + $0x38] sm:$0xff]
    %v39 = vld [vmem:[%s1 + $0x40] sm:$0xff]
    %v40 = vld [vmem:[%s1 + $0x48] sm:$0xff]
    %v41 = vld [vmem:[%s1 + $0x50] sm:$0xff]
    %v42 = vld [vmem:[%s1 + $0x58] sm:$0xff]
    %v43 = vld [vmem:[%s1 + $0x60] sm:$0xff]
    %v44 = vld [vmem:[%s1 + $0x68] sm:$0xff]
    %v45 = vld [vmem:[%s1 + $0x70] sm:$0xff]
    %v46 = vld [vmem:[%s1 + $0x78] sm:$0xff]
    %v47 = vpack.c.bf16 %v32, %v31
    %v48 = vpack.c.bf16 %v34, %v33
    %v49 = vpack.c.bf16 %v36, %v35
    %v50 = vpack.c.bf16 %v38, %v37
    %v51 = vpack.c.bf16 %v40, %v39
    %v52 = vpack.c.bf16 %v42, %v41
    %v53 = vpack.c.bf16 %v44, %v43
    %v54 = vpack.c.bf16 %v46, %v45
    %vm55 = vcmask 261120
    %v57 = vsel %vm55, %v30, 0
    %v60 = vsel %vm55, %v47, 0
    %v63 = vsel %vm55, %v48, 0
    %v66 = vsel %vm55, %v49, 0
    %v69 = vsel %vm55, %v50, 0
    %v72 = vsel %vm55, %v51, 0
    %v75 = vsel %vm55, %v52, 0
    %v78 = vsel %vm55, %v53, 0
    %v81 = vsel %vm55, %v54, 0
    %83 = vmatpush.bf16.xpose.msra.mxu0 %v81
    %84 = vmatpush.bf16.xpose.msra.mxu0 %v78
    %85 = vmatpush.bf16.xpose.msra.mxu0 %v75
    %86 = vmatpush.bf16.xpose.msra.mxu0 %v72
    %87 = vmatpush.bf16.xpose.msra.mxu0 %v69
    %88 = vmatpush.bf16.xpose.msra.mxu0 %v66
    %89 = vmatpush.bf16.xpose.msra.mxu0 %v63
    %90 = vmatpush.bf16.xpose.msra.mxu0 %v60
    %91 = vmatmul.bf16.gmra.mxu0 %v57
    %v92 = vpop.f32.mrf.mxu0
    %v93 = vadd.f32 0.0, %v92
    %v94 = vpop.f32.mrf.mxu0
    %95 = vdwg.mxu0
    %v96 = vrot.slane %v93, 4
    %v97 = vmax.f32 %v93, %v96
    %v98 = vrot.slane %v97, 2
    %v99 = vmax.f32 %v97, %v98
    %v100 = vrot.slane %v99, 1
    %v101 = vmax.f32 %v99, %v100
    %v102 = vsub.f32 %v93, %v101
    %v103 = vmul.f32 %v102, 1.442695
    %v104 = vpow.pop %v103
    %v105 = vrot.slane %v104, 4
    %v106 = vadd.f32 %v104, %v105
    %v107 = vrot.slane %v106, 2
    %v108 = vadd.f32 %v106, %v107
    %v109 = vrot.slane %v108, 1
    %v110 = vadd.f32 %v108, %v109
    %v111 = vrcp.pop %v110
    %v112 = vmul.f32 %v104, %v111
    %v113 = vpack.c.bf16 %v112, %v112
    %v114 = vld [vmem:[%s2] sm:$0xff]
    %v115 = vld [vmem:[%s2 + $0x8] sm:$0xff]
    %v116 = vld [vmem:[%s2 + $0x10] sm:$0xff]
    %v117 = vld [vmem:[%s2 + $0x18] sm:$0xff]
    %v118 = vld [vmem:[%s2 + $0x20] sm:$0xff]
    %v119 = vld [vmem:[%s2 + $0x28] sm:$0xff]
    %v120 = vld [vmem:[%s2 + $0x30] sm:$0xff]
    %v121 = vld [vmem:[%s2 + $0x38] sm:$0xff]
    %v122 = vld [vmem:[%s2 + $0x40] sm:$0xff]
    %v123 = vld [vmem:[%s2 + $0x48] sm:$0xff]
    %v124 = vld [vmem:[%s2 + $0x50] sm:$0xff]
    %v125 = vld [vmem:[%s2 + $0x58] sm:$0xff]
    %v126 = vld [vmem:[%s2 + $0x60] sm:$0xff]
    %v127 = vld [vmem:[%s2 + $0x68] sm:$0xff]
    %v128 = vld [vmem:[%s2 + $0x70] sm:$0xff]
    %v129 = vld [vmem:[%s2 + $0x78] sm:$0xff]
    %v130 = vpack.c.bf16 %v115, %v114
    %v131 = vpack.c.bf16 %v117, %v116
    %v132 = vpack.c.bf16 %v119, %v118
    %v133 = vpack.c.bf16 %v121, %v120
    %v134 = vpack.c.bf16 %v123, %v122
    %v135 = vpack.c.bf16 %v125, %v124
    %v136 = vpack.c.bf16 %v127, %v126
    %v137 = vpack.c.bf16 %v129, %v128
    %138 = vmatpush.bf16.msra.mxu0 %v137
    %139 = vmatpush.bf16.msra.mxu0 %v136
    %140 = vmatpush.bf16.msra.mxu0 %v135
    %141 = vmatpush.bf16.msra.mxu0 %v134
    %142 = vmatpush.bf16.msra.mxu0 %v133
    %143 = vmatpush.bf16.msra.mxu0 %v132
    %144 = vmatpush.bf16.msra.mxu0 %v131
    %145 = vmatpush.bf16.msra.mxu0 %v130
    %146 = vmatmul.bf16.gmra.mxu0 %v113
    %v147 = vpop.f32.mrf.mxu0
    %v148 = vadd.f32 0.0, %v147
    %v149 = vpop.f32.mrf.mxu0
    %150 = vdwg.mxu0
    %v151 = vld [vmem:[#allocation3] sm:$0xff]
    %v152 = vadd.f32 %v151, %v148
    %153 = vst [vmem:[#allocation3] sm:$0xff] %v152
    %s154 = scalar_lea.vmem [#allocation2], 4
    %v155 = vld [vmem:[%s154] sm:$0xf]
    %s156 = scalar_lea.vmem %s1, 128
    %v157 = vld [vmem:[%s156] sm:$0xff]
    %v158 = vld [vmem:[%s156 + $0x8] sm:$0xff]
    %v159 = vld [vmem:[%s156 + $0x10] sm:$0xff]
    %v160 = vld [vmem:[%s156 + $0x18] sm:$0xff]
    %v161 = vld [vmem:[%s156 + $0x20] sm:$0xff]
    %v162 = vld [vmem:[%s156 + $0x28] sm:$0xff]
    %v163 = vld [vmem:[%s156 + $0x30] sm:$0xff]
    %v164 = vld [vmem:[%s156 + $0x38] sm:$0xff]
    %v165 = vld [vmem:[%s156 + $0x40] sm:$0xff]
    %v166 = vld [vmem:[%s156 + $0x48] sm:$0xff]
    %v167 = vld [vmem:[%s156 + $0x50] sm:$0xff]
    %v168 = vld [vmem:[%s156 + $0x58] sm:$0xff]
    %v169 = vld [vmem:[%s156 + $0x60] sm:$0xff]
    %v170 = vld [vmem:[%s156 + $0x68] sm:$0xff]
    %v171 = vld [vmem:[%s156 + $0x70] sm:$0xff]
    %v172 = vld [vmem:[%s156 + $0x78] sm:$0xff]
    %v173 = vpack.c.bf16 %v158, %v157
    %v174 = vpack.c.bf16 %v160, %v159
    %v175 = vpack.c.bf16 %v162, %v161
    %v176 = vpack.c.bf16 %v164, %v163
    %v177 = vpack.c.bf16 %v166, %v165
    %v178 = vpack.c.bf16 %v168, %v167
    %v179 = vpack.c.bf16 %v170, %v169
    %v180 = vpack.c.bf16 %v172, %v171
    %v182 = vsel %vm55, %v155, 0
    %v185 = vsel %vm55, %v173, 0
    %v188 = vsel %vm55, %v174, 0
    %v191 = vsel %vm55, %v175, 0
    %v194 = vsel %vm55, %v176, 0
    %v197 = vsel %vm55, %v177, 0
    %v200 = vsel %vm55, %v178, 0
    %v203 = vsel %vm55, %v179, 0
    %v206 = vsel %vm55, %v180, 0
    %208 = vmatpush.bf16.xpose.msra.mxu0 %v206
    %209 = vmatpush.bf16.xpose.msra.mxu0 %v203
    %210 = vmatpush.bf16.xpose.msra.mxu0 %v200
    %211 = vmatpush.bf16.xpose.msra.mxu0 %v197
    %212 = vmatpush.bf16.xpose.msra.mxu0 %v194
    %213 = vmatpush.bf16.xpose.msra.mxu0 %v191
    %214 = vmatpush.bf16.xpose.msra.mxu0 %v188
    %215 = vmatpush.bf16.xpose.msra.mxu0 %v185
    %216 = vmatmul.bf16.gmra.mxu0 %v182
    %v217 = vpop.f32.mrf.mxu0
    %v218 = vadd.f32 0.0, %v217
    %v219 = vpop.f32.mrf.mxu0
    %220 = vdwg.mxu0
    %v221 = vrot.slane %v218, 4
    %v222 = vmax.f32 %v218, %v221
    %v223 = vrot.slane %v222, 2
    %v224 = vmax.f32 %v222, %v223
    %v225 = vrot.slane %v224, 1
    %v226 = vmax.f32 %v224, %v225
    %v227 = vsub.f32 %v218, %v226
    %v228 = vmul.f32 %v227, 1.442695
    %v229 = vpow.pop %v228
    %v230 = vrot.slane %v229, 4
    %v231 = vadd.f32 %v229, %v230
    %v232 = vrot.slane %v231, 2
    %v233 = vadd.f32 %v231, %v232
    %v234 = vrot.slane %v233, 1
    %v235 = vadd.f32 %v233, %v234
    %v236 = vrcp.pop %v235
    %v237 = vmul.f32 %v229, %v236
    %v238 = vpack.c.bf16 %v237, %v237
    %s239 = scalar_lea.vmem %s2, 128
    %v240 = vld [vmem:[%s239] sm:$0xff]
    %v241 = vld [vmem:[%s239 + $0x8] sm:$0xff]
    %v242 = vld [vmem:[%s239 + $0x10] sm:$0xff]
    %v243 = vld [vmem:[%s239 + $0x18] sm:$0xff]
    %v244 = vld [vmem:[%s239 + $0x20] sm:$0xff]
    %v245 = vld [vmem:[%s239 + $0x28] sm:$0xff]
    %v246 = vld [vmem:[%s239 + $0x30] sm:$0xff]
    %v247 = vld [vmem:[%s239 + $0x38] sm:$0xff]
    %v248 = vld [vmem:[%s239 + $0x40] sm:$0xff]
    %v249 = vld [vmem:[%s239 + $0x48] sm:$0xff]
    %v250 = vld [vmem:[%s239 + $0x50] sm:$0xff]
    %v251 = vld [vmem:[%s239 + $0x58] sm:$0xff]
    %v252 = vld [vmem:[%s239 + $0x60] sm:$0xff]
    %v253 = vld [vmem:[%s239 + $0x68] sm:$0xff]
    %v254 = vld [vmem:[%s239 + $0x70] sm:$0xff]
    %v255 = vld [vmem:[%s239 + $0x78] sm:$0xff]
    %v256 = vpack.c.bf16 %v241, %v240
    %v257 = vpack.c.bf16 %v243, %v242
    %v258 = vpack.c.bf16 %v245, %v244
    %v259 = vpack.c.bf16 %v247, %v246
    %v260 = vpack.c.bf16 %v249, %v248
    %v261 = vpack.c.bf16 %v251, %v250
    %v262 = vpack.c.bf16 %v253, %v252
    %v263 = vpack.c.bf16 %v255, %v254
    %264 = vmatpush.bf16.msra.mxu0 %v263
    %265 = vmatpush.bf16.msra.mxu0 %v262
    %266 = vmatpush.bf16.msra.mxu0 %v261
    %267 = vmatpush.bf16.msra.mxu0 %v260
    %268 = vmatpush.bf16.msra.mxu0 %v259
    %269 = vmatpush.bf16.msra.mxu0 %v258
    %270 = vmatpush.bf16.msra.mxu0 %v257
    %271 = vmatpush.bf16.msra.mxu0 %v256
    %272 = vmatmul.bf16.gmra.mxu0 %v238
    %v273 = vpop.f32.mrf.mxu0
    %v274 = vadd.f32 0.0, %v273
    %v275 = vpop.f32.mrf.mxu0
    %276 = vdwg.mxu0
    %s277 = scalar_lea.vmem [#allocation3], 8
    %v278 = vld [vmem:[%s277] sm:$0xff]
    %v279 = vadd.f32 %v278, %v274
    %280 = vst [vmem:[%s277] sm:$0xff] %v279
    // Predicated region
    $region18: #{tpu_custom_call.1} parent=1 // pred_check
      _
    $region19: #{tpu_custom_call.1} parent=1 // pred_check_branch
      %282 = sbr.rel (0) target = $region21
    $region20: #{tpu_custom_call.1} parent=1 // pred_region
      %284 = vsyncadd [#allocation4], 0
      %s285 = sshll.u32 [#allocation3], 4
      %s286 = int_to_ptr.vmem [resolvable:$true] %s285
      %s287 = sshll.u32 %s3, 4
      %s288 = int_to_ptr.hbm [resolvable:$true] %s287
      %293 = dma.vmem_to_hbm [thread:$0]  %s286, 256, %s288, [#allocation4], 128, 128, 8
    $region21: #{tpu_custom_call.1} parent=1 // pred_fallthru
      _
    // Predicated region
    $region22: #{tpu_custom_call.1} parent=1 // pred_check
      _
    $region23: #{tpu_custom_call.1} parent=1 // pred_check_branch
      %295 = sbr.rel (0) target = $region25
    $region24: #{tpu_custom_call.1} parent=1 // pred_region
      %297 = dma.done [#allocation4], 256
    $region25: #{tpu_custom_call.1} parent=1 // pred_fallthru
      _
    %298 = vsyncpa [#allocation4], 1

</llo_original>
